<compile_context>
chip_gen: v5e
topology: v5e:2x2
jax: 0.10.0
libtpu: 0.0.40
codegen_flags: <defaults>
</compile_context>

<pallas_src>
import jax
import jax.numpy as jnp
from jax.experimental import pallas as pl
from jax.experimental.pallas import tpu as pltpu


def _identity_kernel(x_ref, o_ref):
    # Elementwise identity: copy the whole VMEM tile.
    o_ref[...] = x_ref[...]


_LANE_CANDIDATES = (8192, 4096, 2048, 1024, 512, 256, 128)
_TARGET_BLOCK_BYTES = 2 * 1024 * 1024  # ~2 MiB per block (safe on v5e/v6e/v7x)


def _min_sublanes(dtype) -> int:
    """Native packed sublane count for the dtype (f32:8, bf16:16, int8/fp8:32)."""
    itemsize = jnp.dtype(dtype).itemsize
    return {4: 8, 2: 16, 1: 32}.get(itemsize, 8)


def _pallas_identity(x: jnp.ndarray) -> jnp.ndarray:
    """Identity forward routed through a single streaming-copy Pallas kernel."""
    if x.size == 0:
        return x

    orig_shape = x.shape
    dtype = x.dtype
    itemsize = jnp.dtype(dtype).itemsize
    sub = _min_sublanes(dtype)
    min_tile = sub * 128

    n = x.size
    pad = (-n) % min_tile          # 0 when the size tiles cleanly (common case)
    n_work = n + pad

    # Widest lane count that factors n_work with a sublane-aligned row count.
    cols = 128
    for c in _LANE_CANDIDATES:
        if n_work % c == 0 and (n_work // c) % sub == 0:
            cols = c
            break
    rows = n_work // cols

    # Block rows sized for ~2 MiB per block, rounded to the packed sublane count.
    target_rows = max(sub, (_TARGET_BLOCK_BYTES // (cols * itemsize)) // sub * sub)
    block_rows = min(rows, target_rows)

    if pad == 0:
        x2d = x.reshape(rows, cols)                        # no data movement
    else:
        # Ragged-size fallback: pad then slice (extra HBM copies, rare path).
        x2d = jnp.pad(x.reshape(-1), (0, pad)).reshape(rows, cols)

    out2d = pl.pallas_call(
        _identity_kernel,
        out_shape=jax.ShapeDtypeStruct((rows, cols), dtype),
        grid_spec=pltpu.PrefetchScalarGridSpec(
            num_scalar_prefetch=0,
            grid=(pl.cdiv(rows, block_rows),),
            in_specs=[pl.BlockSpec((block_rows, cols), lambda i: (i, 0))],
            out_specs=pl.BlockSpec((block_rows, cols), lambda i: (i, 0)),
        ),
        compiler_params=pltpu.CompilerParams(
            dimension_semantics=("parallel",),   # lets v7x shard across 2 TCs
            vmem_limit_bytes=32 * 1024 * 1024,
        ),
        input_output_aliases={0: 0},             # reuse the input HBM buffer
        cost_estimate=pl.CostEstimate(
            flops=0, transcendentals=0, bytes_accessed=2 * n_work * itemsize),
    )(x2d)

    if pad == 0:
        return out2d.reshape(orig_shape)
    return out2d.reshape(-1)[:n].reshape(orig_shape)


# Straight-through gradient: identity forward, identity backward.
@jax.custom_vjp
def straight_through(x):
    return _pallas_identity(x)


def _st_fwd(x):
    return _pallas_identity(x), None


def _st_bwd(_, g):
    return (g,)


straight_through.defvjp(_st_fwd, _st_bwd)


class StraightThrough:
    """JAX/Pallas port of the PyTorch StraightThrough module (pure identity)."""

    def __init__(self, channel_num: int = 1):
        # No parameters; channel_num is unused (as in the original module).
        self.channel_num = channel_num

    def __call__(self, x):
        return straight_through(x)


if __name__ == "__main__":
    key = jax.random.PRNGKey(0)
    # NCHW input, small shapes: batch=2, channels=4, spatial=16x16
    x = jax.random.normal(key, (2, 4, 16, 16), dtype=jnp.float32)

    module = StraightThrough(channel_num=4)
    y = module(x)
    y = jax.block_until_ready(y)

    assert y.shape == x.shape
    assert y.dtype == x.dtype
    assert bool(jnp.all(y == x))

    print("KERNEL_OK")
</pallas_src>

<mosaic_0001>
module attributes {stable_mosaic.version = 11 : i64} {
  func.func @_identity_kernel(%arg0: i32, %arg1: memref<8x256xf32, #tpu.memory_space<vmem>>, %arg2: memref<8x256xf32, #tpu.memory_space<vmem>>) attributes {dimension_semantics = [#tpu.dimension_semantics<parallel>], iteration_bounds = array<i64: 1>, scalar_prefetch = 0 : i64, scratch_operands = 0 : i64, tpu.core_type = #tpu.core_type<tc>, window_params = [{transform_indices = @transform_0, window_bounds = array<i64: 8, 256>}, {transform_indices = @transform_1, window_bounds = array<i64: 8, 256>}]} {
    %c0 = arith.constant 0 : index
    %c0_0 = arith.constant 0 : index
    %0 = vector.load %arg1[%c0, %c0_0] : memref<8x256xf32, #tpu.memory_space<vmem>>, vector<8x256xf32>
    %c0_1 = arith.constant 0 : index
    %c0_2 = arith.constant 0 : index
    %1 = vector.load %arg2[%c0_1, %c0_2] : memref<8x256xf32, #tpu.memory_space<vmem>>, vector<8x256xf32>
    tpu.vector_store %arg2[%c0_1, %c0_2], %0 {strides = array<i32>} : memref<8x256xf32, #tpu.memory_space<vmem>>, vector<8x256xf32>,
    return
  }
  func.func @transform_0(%arg0: i32) -> (i32, i32) {
    %c0_i32 = arith.constant 0 : i32
    %c0_i32_0 = arith.constant 0 : i32
    return %arg0, %c0_i32 : i32, i32
  }
  func.func @transform_1(%arg0: i32) -> (i32, i32) {
    %c0_i32 = arith.constant 0 : i32
    %c0_i32_0 = arith.constant 0 : i32
    return %arg0, %c0_i32 : i32, i32
  }
}

</mosaic_0001>

<llo_original>
// kernel: tpu_custom_call.1
$region0: #{tpu_custom_call.1}
  #allocation0 [shape = 'u32[]', space=smem, size = 0x4, offset = 0x4, fixed_abs, tag = 'smem constant byte address 0x4 - core index']
  #allocation1 [shape = 'u32[72,128]{1,0:T(1,128)}', space=vmem, size = 0x9000, scoped, tag = 'internal scratch']
  %s0 = inlined_call_operand.hbm [shape: f32[8,256], index: 0, kind: input, shape index: {}, may-alias: {0,1}]
  %s1 = inlined_call_operand.hbm [shape: f32[8,256], index: 1, kind: output, shape index: {}, may-alias: {0,1}]
  %s2 = sld [smem:[#allocation0]]
  $region18: #{tpu_custom_call.1} parent=0
    _
  %s4 = ssub.s32 1, %s2
  %s5 = scalar_select 0, %s4, %s2
  $region1: #{tpu_custom_call.1} parent=0
    #allocation2 [shape = 'u8[8192]{0}', space=vmem, size = 0x2000, scoped, tag = 'input window, operand 0, single buffered']
    #allocation3 [shape = 's32[1]{0}', space=sflag, size = 0x4, scoped, tag = 'scoped memory for tpu_custom_call.1']
    #allocation4 [shape = 's32[1]{0}', space=sflag, size = 0x4, scoped, tag = 'scoped memory for tpu_custom_call.1']
    #allocation5 [shape = 'u8[8192]{0}', space=vmem, size = 0x2000, scoped, tag = 'output window, operand 0, single buffered']
    %6 = vsyncpa [#allocation3], 0
    %7 = vsyncpa [#allocation4], 0
    // Predicated region
    $region2: #{tpu_custom_call.1} parent=1 // pred_check
      _
    $region3: #{tpu_custom_call.1} parent=1 // pred_check_branch
      %9 = sbr.rel (0) target = $region5
    $region4: #{tpu_custom_call.1} parent=1 // pred_region
      %11 = vsyncadd [#allocation3], 0
      %s13 = sshll.u32 %s0, 4
      %s14 = int_to_ptr.hbm [resolvable:$true] %s13
      %s15 = sshll.u32 [#allocation2], 4
      %s16 = int_to_ptr.vmem [resolvable:$true] %s15
      %18 = dma.hbm_to_vmem [thread:$0]  %s14, 256, %s16, [#allocation3]
    $region5: #{tpu_custom_call.1} parent=1 // pred_fallthru
      _
    // Predicated region
    $region6: #{tpu_custom_call.1} parent=1 // pred_check
      _
    $region7: #{tpu_custom_call.1} parent=1 // pred_check_branch
      %20 = sbr.rel (0) target = $region9
    $region8: #{tpu_custom_call.1} parent=1 // pred_region
      %22 = dma.done [#allocation3], 256
    $region9: #{tpu_custom_call.1} parent=1 // pred_fallthru
      _
    %v23 = vld [vmem:[#allocation2] sm:$0xff]
    %v24 = vld [vmem:[#allocation2 + $0x8] sm:$0xff]
    %25 = vst [vmem:[#allocation5] sm:$0xff] %v23
    %26 = vst [vmem:[#allocation5 + $0x8] sm:$0xff] %v24
    // Predicated region
    $region10: #{tpu_custom_call.1} parent=1 // pred_check
      _
    $region11: #{tpu_custom_call.1} parent=1 // pred_check_branch
      %28 = sbr.rel (0) target = $region13
    $region12: #{tpu_custom_call.1} parent=1 // pred_region
      %30 = vsyncadd [#allocation4], 0
      %s32 = sshll.u32 [#allocation5], 4
      %s33 = int_to_ptr.vmem [resolvable:$true] %s32
      %s34 = sshll.u32 %s1, 4
      %s35 = int_to_ptr.hbm [resolvable:$true] %s34
      %37 = dma.vmem_to_hbm [thread:$0]  %s33, 256, %s35, [#allocation4]
    $region13: #{tpu_custom_call.1} parent=1 // pred_fallthru
      _
    // Predicated region
    $region14: #{tpu_custom_call.1} parent=1 // pred_check
      _
    $region15: #{tpu_custom_call.1} parent=1 // pred_check_branch
      %39 = sbr.rel (0) target = $region17
    $region16: #{tpu_custom_call.1} parent=1 // pred_region
      %41 = dma.done [#allocation4], 256
    $region17: #{tpu_custom_call.1} parent=1 // pred_fallthru
      _
    %42 = vsyncpa [#allocation3], 1
    %43 = vsyncpa [#allocation4], 1

</llo_original>
